<compile_context>
chip_gen: v5e
topology: v5e:2x2
jax: 0.10.0
libtpu: 0.0.40
codegen_flags: <defaults>
</compile_context>

<pallas_src>
import functools

import jax
import jax.numpy as jnp
from jax import lax
from jax.experimental import pallas as pl
from jax.experimental.pallas import tpu as pltpu


def _round_up(n, m):
    return ((n + m - 1) // m) * m


def _cdiv(a, b):
    return -(-a // b)


def _vmem_capacity_bytes():
    """Physical VMEM of the attached TPU; conservative (v7x-sized) fallback."""
    try:
        info = pltpu.get_tpu_info()
        cap = int(getattr(info, "vmem_capacity_bytes", 0) or 0)
        if cap > 0:
            return cap
    except Exception:
        pass
    return 64 * 1024 * 1024


def _nn_kernel(x_ref, w1_ref, b1_ref, w2_ref, b2_ref, o_ref, *,
               normalize_emb, eps):
    # nn1: Linear(input_size -> hidden).  x and w1 arrive already in the MXU
    # dtype (bf16 by default); accumulate in f32.
    h = jnp.dot(x_ref[...], w1_ref[...], preferred_element_type=jnp.float32)
    h = h + b1_ref[...]                      # bias add in f32

    # dropout: identity at inference time.

    # nn2: Linear(hidden -> output_size).
    out = jnp.dot(h.astype(w2_ref.dtype), w2_ref[...],
                  preferred_element_type=jnp.float32)
    out = out + b2_ref[...]

    if normalize_emb:
        # Row-wise L2 norm: rsqrt (EUP slot) * out (VPU) instead of sqrt + div.
        sumsq = jnp.sum(out * out, axis=1, keepdims=True)
        if eps:
            sumsq = sumsq + eps
        out = out * lax.rsqrt(sumsq)

    o_ref[...] = out.astype(o_ref.dtype)


def _choose_batch_tile(B, in_size, hid, out_size, mm_bytes, out_bytes,
                       vmem_budget):
    """Largest sublane-aligned batch tile fitting the VMEM budget."""
    sub = 8 if mm_bytes >= 4 else 16          # sublane granularity of the x tile
    # Weights/biases are double-buffered by the default pipeliner even though
    # their index_map is constant -> count them twice.
    resident = 2 * ((in_size * hid + hid * out_size) * mm_bytes
                    + (hid + out_size) * 4)
    # Per batch-row VMEM: double-buffered x + double-buffered out, plus the
    # in-kernel temporaries (f32 h, recast h, f32 out, out*out) and ~1 KiB of
    # slack for anything else the tracer materializes.
    per_row = (2 * in_size * mm_bytes
               + 2 * out_size * out_bytes
               + hid * 4 + hid * mm_bytes
               + 2 * out_size * 4
               + 1024)
    avail = max(vmem_budget - resident, sub * per_row)
    tb = max(sub, (int(avail) // per_row // sub) * sub)
    tb = min(tb, 1024)                        # diminishing returns past ~1K rows
    if B >= 2 * sub:
        # >= 2 grid steps so both v7x TensorCores get work under the
        # "parallel" batch axis; negligible cost on single-TC chips.
        tb = min(tb, _round_up(_cdiv(B, 2), sub))
    tb = min(tb, _round_up(B, sub))           # never bigger than needed
    return tb


def nn_forward(x, w1, b1, w2, b2, *, normalize_emb=True,
               matmul_dtype=jnp.bfloat16, out_dtype=jnp.float32, eps=0.0):
    """out = l2norm((x @ w1 + b1) @ w2 + b2)   (l2norm optional).

    x:  [B, input_size]
    w1: [input_size, hidden]   b1: [hidden]
    w2: [hidden, output_size]  b2: [output_size]
    (weights already transposed relative to torch.nn.Linear storage)
    """
    x = jnp.asarray(x)
    B, in_size = x.shape
    hid = w1.shape[1]
    out_size = w2.shape[1]

    mm_dtype = jax.dtypes.canonicalize_dtype(matmul_dtype)
    mm_bytes = mm_dtype.itemsize
    out_dtype = jax.dtypes.canonicalize_dtype(out_dtype)
    out_bytes = out_dtype.itemsize

    # No padded HBM copies: feature dims go in as full-array blocks and the
    # batch axis uses a partial boundary block.  Only dtype casts remain (and
    # the x cast may fuse into the pallas_call via allow_input_fusion).
    x_c = x.astype(mm_dtype)
    w1_c = jnp.asarray(w1, mm_dtype)
    w2_c = jnp.asarray(w2, mm_dtype)
    b1_c = jnp.asarray(b1, jnp.float32).reshape(1, hid)
    b2_c = jnp.asarray(b2, jnp.float32).reshape(1, out_size)

    vmem_cap = _vmem_capacity_bytes()
    vmem_budget = int(vmem_cap * 0.6)                      # tile-selection budget
    vmem_limit = max(min(int(vmem_cap * 0.8), vmem_cap - (8 << 20)),
                     32 * 1024 * 1024)

    tb = _choose_batch_tile(B, in_size, hid, out_size, mm_bytes, out_bytes,
                            vmem_budget)
    grid = (_cdiv(B, tb),)

    kernel = functools.partial(_nn_kernel, normalize_emb=normalize_emb, eps=eps)

    cost = pl.CostEstimate(
        flops=2 * B * (in_size * hid + hid * out_size),
        transcendentals=B if normalize_emb else 0,
        bytes_accessed=(B * in_size * mm_bytes
                        + (in_size * hid + hid * out_size) * mm_bytes
                        + (hid + out_size) * 4
                        + B * out_size * out_bytes))

    out = pl.pallas_call(
        kernel,
        out_shape=jax.ShapeDtypeStruct((B, out_size), out_dtype),
        grid=grid,
        in_specs=[
            pl.BlockSpec((tb, in_size), lambda i: (i, 0)),      # x: batch-tiled
            pl.BlockSpec((in_size, hid), lambda i: (0, 0)),     # w1: VMEM-resident
            pl.BlockSpec((1, hid), lambda i: (0, 0)),           # b1: VMEM-resident
            pl.BlockSpec((hid, out_size), lambda i: (0, 0)),    # w2: VMEM-resident
            pl.BlockSpec((1, out_size), lambda i: (0, 0)),      # b2: VMEM-resident
        ],
        out_specs=pl.BlockSpec((tb, out_size), lambda i: (i, 0)),
        compiler_params=pltpu.CompilerParams(
            dimension_semantics=("parallel",),       # megacore-shard on v7x
            vmem_limit_bytes=vmem_limit,
            allow_input_fusion=[True, True, True, True, True]),
        cost_estimate=cost,
    )(x_c, w1_c, b1_c, w2_c, b2_c)

    return out


if __name__ == "__main__":
    # Small shapes consistent with the module's forward:
    #   input_size=32, n_hidden=64, output_size=16, batch=8
    B, input_size, hidden_size, output_size = 8, 32, 64, 16

    key = jax.random.PRNGKey(0)
    kx, k1, k2, k3, k4 = jax.random.split(key, 5)

    x = jax.random.normal(kx, (B, input_size), dtype=jnp.float32)
    lim1 = 1.0 / input_size ** 0.5
    lim2 = 1.0 / hidden_size ** 0.5
    w1 = jax.random.uniform(k1, (input_size, hidden_size), jnp.float32, -lim1, lim1)
    b1 = jax.random.uniform(k2, (hidden_size,), jnp.float32, -lim1, lim1)
    w2 = jax.random.uniform(k3, (hidden_size, output_size), jnp.float32, -lim2, lim2)
    b2 = jax.random.uniform(k4, (output_size,), jnp.float32, -lim2, lim2)

    # Plain-JAX reference (same math as the PyTorch forward in eval mode).
    h_ref = x @ w1 + b1
    o_full = h_ref @ w2 + b2
    o_norm = o_full / jnp.sqrt(jnp.sum(o_full ** 2, axis=1, keepdims=True))

    # f32 MXU path: tight numerical check (test-only; production default is bf16).
    out_f32 = nn_forward(x, w1, b1, w2, b2, normalize_emb=True,
                         matmul_dtype=jnp.float32)
    jax.block_until_ready(out_f32)
    assert out_f32.shape == (B, output_size)
    assert jnp.allclose(out_f32, o_norm, atol=1e-5, rtol=1e-5)

    # Default fast path (bf16 MXU inputs, f32 accumulation): loose tolerance.
    out_bf16 = nn_forward(x, w1, b1, w2, b2, normalize_emb=True)
    jax.block_until_ready(out_bf16)
    assert out_bf16.shape == (B, output_size)
    assert jnp.allclose(out_bf16, o_norm, atol=3e-2, rtol=3e-2)

    # normalize_emb=False branch.
    out_nonorm = nn_forward(x, w1, b1, w2, b2, normalize_emb=False,
                            matmul_dtype=jnp.float32)
    jax.block_until_ready(out_nonorm)
    assert jnp.allclose(out_nonorm, o_full, atol=1e-5, rtol=1e-5)

    print("KERNEL_OK")
</pallas_src>

<mosaic_0001>
module attributes {stable_mosaic.version = 11 : i64} {
  func.func @_nn_kernel(%arg0: i32, %arg1: memref<8x32xf32, #tpu.memory_space<vmem>>, %arg2: memref<32x64xf32, #tpu.memory_space<vmem>>, %arg3: memref<1x64xf32, #tpu.memory_space<vmem>>, %arg4: memref<64x16xf32, #tpu.memory_space<vmem>>, %arg5: memref<1x16xf32, #tpu.memory_space<vmem>>, %arg6: memref<8x16xf32, #tpu.memory_space<vmem>>) attributes {dimension_semantics = [#tpu.dimension_semantics<parallel>], iteration_bounds = array<i64: 1>, scalar_prefetch = 0 : i64, scratch_operands = 0 : i64, tpu.core_type = #tpu.core_type<tc>, window_params = [{transform_indices = @transform_0, window_bounds = array<i64: 8, 32>}, {pipeline_mode = #tpu.pipeline_mode<synchronous>, transform_indices = @transform_1, window_bounds = array<i64: 32, 64>}, {pipeline_mode = #tpu.pipeline_mode<synchronous>, transform_indices = @transform_2, window_bounds = array<i64: 1, 64>}, {pipeline_mode = #tpu.pipeline_mode<synchronous>, transform_indices = @transform_3, window_bounds = array<i64: 64, 16>}, {pipeline_mode = #tpu.pipeline_mode<synchronous>, transform_indices = @transform_4, window_bounds = array<i64: 1, 16>}, {transform_indices = @transform_5, window_bounds = array<i64: 8, 16>}]} {
    %c0 = arith.constant 0 : index
    %c0_0 = arith.constant 0 : index
    %0 = vector.load %arg1[%c0, %c0_0] : memref<8x32xf32, #tpu.memory_space<vmem>>, vector<8x32xf32>
    %c0_1 = arith.constant 0 : index
    %c0_2 = arith.constant 0 : index
    %1 = vector.load %arg2[%c0_1, %c0_2] : memref<32x64xf32, #tpu.memory_space<vmem>>, vector<32x64xf32>
    %cst = arith.constant dense<0.000000e+00> : vector<8x64xf32>
    %2 = tpu.matmul %0, %1, %cst {dimension_numbers = #tpu.dot_dimension_numbers<[1], [0], [0], [1], [0, 0, 1, 1], [], []>} : vector<8x32xf32>, vector<32x64xf32>, vector<8x64xf32> -> vector<8x64xf32>
    %c0_3 = arith.constant 0 : index
    %c0_4 = arith.constant 0 : index
    %3 = vector.load %arg3[%c0_3, %c0_4] : memref<1x64xf32, #tpu.memory_space<vmem>>, vector<1x64xf32>
    %4 = vector.broadcast %3 : vector<1x64xf32> to vector<8x64xf32>
    %5 = arith.addf %2, %4 : vector<8x64xf32>
    %c0_5 = arith.constant 0 : index
    %c0_6 = arith.constant 0 : index
    %6 = vector.load %arg4[%c0_5, %c0_6] : memref<64x16xf32, #tpu.memory_space<vmem>>, vector<64x16xf32>
    %cst_7 = arith.constant dense<0.000000e+00> : vector<8x16xf32>
    %7 = tpu.matmul %5, %6, %cst_7 {dimension_numbers = #tpu.dot_dimension_numbers<[1], [0], [0], [1], [0, 0, 1, 1], [], []>} : vector<8x64xf32>, vector<64x16xf32>, vector<8x16xf32> -> vector<8x16xf32>
    %c0_8 = arith.constant 0 : index
    %c0_9 = arith.constant 0 : index
    %8 = vector.load %arg5[%c0_8, %c0_9] : memref<1x16xf32, #tpu.memory_space<vmem>>, vector<1x16xf32>
    %9 = vector.broadcast %8 : vector<1x16xf32> to vector<8x16xf32>
    %10 = arith.addf %7, %9 : vector<8x16xf32>
    %11 = arith.mulf %10, %10 : vector<8x16xf32>
    %cst_10 = arith.constant dense<0.000000e+00> : vector<8xf32>
    %12 = vector.multi_reduction <add>, %11, %cst_10 [1] : vector<8x16xf32> to vector<8xf32>
    %13 = vector.shape_cast %12 : vector<8xf32> to vector<8x1xf32>
    %14 = math.rsqrt %13 : vector<8x1xf32>
    %15 = vector.broadcast %14 : vector<8x1xf32> to vector<8x16xf32>
    %16 = arith.mulf %10, %15 : vector<8x16xf32>
    %c0_11 = arith.constant 0 : index
    %c0_12 = arith.constant 0 : index
    %17 = vector.load %arg6[%c0_11, %c0_12] : memref<8x16xf32, #tpu.memory_space<vmem>>, vector<8x16xf32>
    tpu.vector_store %arg6[%c0_11, %c0_12], %16 {strides = array<i32>} : memref<8x16xf32, #tpu.memory_space<vmem>>, vector<8x16xf32>,
    return
  }
  func.func @transform_0(%arg0: i32) -> (i32, i32) {
    %c0_i32 = arith.constant 0 : i32
    %c0_i32_0 = arith.constant 0 : i32
    return %arg0, %c0_i32 : i32, i32
  }
  func.func @transform_1(%arg0: i32) -> (i32, i32) {
    %c0_i32 = arith.constant 0 : i32
    %c0_i32_0 = arith.constant 0 : i32
    %c0_i32_1 = arith.constant 0 : i32
    return %c0_i32, %c0_i32_0 : i32, i32
  }
  func.func @transform_2(%arg0: i32) -> (i32, i32) {
    %c0_i32 = arith.constant 0 : i32
    %c0_i32_0 = arith.constant 0 : i32
    %c0_i32_1 = arith.constant 0 : i32
    return %c0_i32, %c0_i32_0 : i32, i32
  }
  func.func @transform_3(%arg0: i32) -> (i32, i32) {
    %c0_i32 = arith.constant 0 : i32
    %c0_i32_0 = arith.constant 0 : i32
    %c0_i32_1 = arith.constant 0 : i32
    return %c0_i32, %c0_i32_0 : i32, i32
  }
  func.func @transform_4(%arg0: i32) -> (i32, i32) {
    %c0_i32 = arith.constant 0 : i32
    %c0_i32_0 = arith.constant 0 : i32
    %c0_i32_1 = arith.constant 0 : i32
    return %c0_i32, %c0_i32_0 : i32, i32
  }
  func.func @transform_5(%arg0: i32) -> (i32, i32) {
    %c0_i32 = arith.constant 0 : i32
    %c0_i32_0 = arith.constant 0 : i32
    return %arg0, %c0_i32 : i32, i32
  }
}

</mosaic_0001>

<llo_original>
// kernel: tpu_custom_call.1
$region0: #{tpu_custom_call.1}
  #allocation0 [shape = 'u32[]', space=smem, size = 0x4, offset = 0x4, fixed_abs, tag = 'smem constant byte address 0x4 - core index']
  #allocation1 [shape = 'u32[72,128]{1,0:T(1,128)}', space=vmem, size = 0x9000, scoped, tag = 'internal scratch']
  %s0 = inlined_call_operand.vmem [shape: f32[8,32], index: 0, kind: input, shape index: {}]
  %s1 = inlined_call_operand.vmem [shape: f32[32,64], index: 1, kind: input, shape index: {}]
  %s2 = inlined_call_operand.vmem [shape: f32[1,64], index: 2, kind: input, shape index: {}]
  %s3 = inlined_call_operand.vmem [shape: f32[64,16], index: 3, kind: input, shape index: {}]
  %s4 = inlined_call_operand.vmem [shape: f32[1,16], index: 4, kind: input, shape index: {}]
  %s5 = inlined_call_operand.hbm [shape: f32[8,16], index: 5, kind: output, shape index: {}]
  %s6 = sld [smem:[#allocation0]]
  $region30: #{tpu_custom_call.1} parent=0
    _
  %s8 = ssub.s32 1, %s6
  %s9 = scalar_select 0, %s8, %s6
  $region1: #{tpu_custom_call.1} parent=0
    #allocation2 [shape = 'u8[4096]{0}', space=vmem, size = 0x1000, scoped, tag = 'output window, operand 0, single buffered']
    #allocation3 [shape = 's32[1]{0}', space=sflag, size = 0x4, scoped, tag = 'scoped memory for tpu_custom_call.1']
    %10 = vsyncpa [#allocation3], 0
    // Predicated region
    $region2: #{tpu_custom_call.1} parent=1 // pred_check
      _
    $region3: #{tpu_custom_call.1} parent=1 // pred_check_branch
      %12 = sbr.rel (0) target = $region5
    $region4: #{tpu_custom_call.1} parent=1 // pred_region
      _
    $region5: #{tpu_custom_call.1} parent=1 // pred_fallthru
      _
    // Predicated region
    $region6: #{tpu_custom_call.1} parent=1 // pred_check
      _
    $region7: #{tpu_custom_call.1} parent=1 // pred_check_branch
      %14 = sbr.rel (0) target = $region9
    $region8: #{tpu_custom_call.1} parent=1 // pred_region
      _
    $region9: #{tpu_custom_call.1} parent=1 // pred_fallthru
      _
    // Predicated region
    $region10: #{tpu_custom_call.1} parent=1 // pred_check
      _
    $region11: #{tpu_custom_call.1} parent=1 // pred_check_branch
      %16 = sbr.rel (0) target = $region13
    $region12: #{tpu_custom_call.1} parent=1 // pred_region
      _
    $region13: #{tpu_custom_call.1} parent=1 // pred_fallthru
      _
    // Predicated region
    $region14: #{tpu_custom_call.1} parent=1 // pred_check
      _
    $region15: #{tpu_custom_call.1} parent=1 // pred_check_branch
      %18 = sbr.rel (0) target = $region17
    $region16: #{tpu_custom_call.1} parent=1 // pred_region
      _
    $region17: #{tpu_custom_call.1} parent=1 // pred_fallthru
      _
    // Predicated region
    $region18: #{tpu_custom_call.1} parent=1 // pred_check
      _
    $region19: #{tpu_custom_call.1} parent=1 // pred_check_branch
      %20 = sbr.rel (0) target = $region21
    $region20: #{tpu_custom_call.1} parent=1 // pred_region
      _
    $region21: #{tpu_custom_call.1} parent=1 // pred_fallthru
      _
    %v21 = vld [vmem:[%s0] sm:$0xff]
    %v22 = vld [vmem:[%s1] sm:$0xff]
    %v23 = vld [vmem:[%s1 + $0x8] sm:$0xff]
    %v24 = vld [vmem:[%s1 + $0x10] sm:$0xff]
    %v25 = vld [vmem:[%s1 + $0x18] sm:$0xff]
    %v26 = vld [vmem:[%s2] sm:$0x1]
    %v28 = vperm.slane %v26, 0
    %vm30 = vcmask 261120
    %v32 = vsel %vm30, %v21, 0
    %34 = vmatpush.msra.mxu0 0.0
    %35 = vmatpush.msra.mxu0 0.0
    %36 = vmatpush.msra.mxu0 0.0
    %37 = vmatpush.msra.mxu0 0.0
    %38 = vmatpush.msra.mxu0 0.0
    %39 = vmatpush.msra.mxu0 0.0
    %40 = vmatpush.msra.mxu0 0.0
    %41 = vmatpush.msra.mxu0 0.0
    %42 = vmatpush.msra.mxu0 0.0
    %43 = vmatpush.msra.mxu0 0.0
    %44 = vmatpush.msra.mxu0 0.0
    %45 = vmatpush.msra.mxu0 0.0
    %46 = vmatpush.msra.mxu0 %v25
    %47 = vmatpush.msra.mxu0 %v24
    %48 = vmatpush.msra.mxu0 %v23
    %49 = vmatpush.msra.mxu0 %v22
    %50 = vmatmul.f32.gmra.mxu0 %v32
    %v51 = vpop.f32.mrf.mxu0
    %v52 = vadd.f32 %v28, %v51
    %53 = vdwg.mxu0
    %v54 = vld [vmem:[%s3] sm:$0xff]
    %v55 = vld [vmem:[%s3 + $0x8] sm:$0xff]
    %v56 = vld [vmem:[%s3 + $0x10] sm:$0xff]
    %v57 = vld [vmem:[%s3 + $0x18] sm:$0xff]
    %v58 = vld [vmem:[%s3 + $0x20] sm:$0xff]
    %v59 = vld [vmem:[%s3 + $0x28] sm:$0xff]
    %v60 = vld [vmem:[%s3 + $0x30] sm:$0xff]
    %v61 = vld [vmem:[%s3 + $0x38] sm:$0xff]
    %v62 = vld [vmem:[%s4] sm:$0x1]
    %v64 = vperm.slane %v62, 0
    %vm66 = vcmask 523264
    %v68 = vsel %vm66, %v52, 0
    %70 = vmatpush.msra.mxu0 0.0
    %71 = vmatpush.msra.mxu0 0.0
    %72 = vmatpush.msra.mxu0 0.0
    %73 = vmatpush.msra.mxu0 0.0
    %74 = vmatpush.msra.mxu0 0.0
    %75 = vmatpush.msra.mxu0 0.0
    %76 = vmatpush.msra.mxu0 0.0
    %77 = vmatpush.msra.mxu0 0.0
    %78 = vmatpush.msra.mxu0 %v61
    %79 = vmatpush.msra.mxu0 %v60
    %80 = vmatpush.msra.mxu0 %v59
    %81 = vmatpush.msra.mxu0 %v58
    %82 = vmatpush.msra.mxu0 %v57
    %83 = vmatpush.msra.mxu0 %v56
    %84 = vmatpush.msra.mxu0 %v55
    %85 = vmatpush.msra.mxu0 %v54
    %86 = vmatmul.f32.gmra.mxu0 %v68
    %v87 = vpop.f32.mrf.mxu0
    %v88 = vadd.f32 %v64, %v87
    %89 = vdwg.mxu0
    %v90 = vmul.f32 %v88, %v88
    %vm91 = vcmask 130048
    %v92 = vsel %vm91, %v90, 0.0
    %93 = vadd.xlane.f32.xlu0 %v92
    %v94 = vpop.xlane.xlu0 %93
    %v95 = vrsqrt.pop %v94
    %v96 = vmul.f32 %v95, %v94
    %v97 = vmul.f32 %v96, %v95
    %v98 = vmul.f32 0.5, %v97
    %v99 = vsub.f32 1.5, %v98
    %v100 = vmul.f32 %v95, %v99
    %vm101 = vweird.f32 %v94
    %vm102 = vweird.f32 %v95
    %vm103 = vmor %vm101, %vm102
    %v104 = vsel %vm103, %v95, %v100
    %v105 = vmul.f32 %v88, %v104
    %106 = vst.msk [vmem:[#allocation2] sm:$0xff] %vm91, %v105
    // Predicated region
    $region22: #{tpu_custom_call.1} parent=1 // pred_check
      _
    $region23: #{tpu_custom_call.1} parent=1 // pred_check_branch
      %108 = sbr.rel (0) target = $region25
    $region24: #{tpu_custom_call.1} parent=1 // pred_region
      %110 = vsyncadd [#allocation3], 0
      %s112 = sshll.u32 [#allocation2], 4
      %s113 = int_to_ptr.vmem [resolvable:$true] %s112
      %s114 = sshll.u32 %s5, 4
      %s115 = int_to_ptr.hbm [resolvable:$true] %s114
      %117 = dma.vmem_to_hbm [thread:$0]  %s113, 128, %s115, [#allocation3]
    $region25: #{tpu_custom_call.1} parent=1 // pred_fallthru
      _
    // Predicated region
    $region26: #{tpu_custom_call.1} parent=1 // pred_check
      _
    $region27: #{tpu_custom_call.1} parent=1 // pred_check_branch
      %119 = sbr.rel (0) target = $region29
    $region28: #{tpu_custom_call.1} parent=1 // pred_region
      %121 = dma.done [#allocation3], 128
    $region29: #{tpu_custom_call.1} parent=1 // pred_fallthru
      _
    %122 = vsyncpa [#allocation3], 1

</llo_original>
